<compile_context>
chip_gen: v7x
topology: tpu7x:2x2x1
jax: 0.10.0
libtpu: 0.0.40
codegen_flags: <defaults>
</compile_context>

<pallas_src>
import functools

import jax
import jax.numpy as jnp
from jax import lax
from jax.experimental import pallas as pl
from jax.experimental.pallas import tpu as pltpu

IN_FEATURES = 85
H1 = 128
H2 = 64
OUT_FEATURES = 2


def mlp_kernel(x_ref, w1_ref, b1_ref, w2_ref, b2_ref, w3t_ref, b3t_ref, o_ref):
    # One batch tile [TB, 85]; all weights VMEM-resident (constant index maps).
    x = x_ref[...].astype(jnp.bfloat16)                                   # [TB, 85] bf16

    h1 = jnp.dot(x, w1_ref[...], preferred_element_type=jnp.float32)      # [TB, 128] f32
    h1 = jnp.maximum(h1 + b1_ref[...], 0.0)                               # ReLU
    # dropout (p=0.15) -> identity in eval mode

    h2 = jnp.dot(h1.astype(jnp.bfloat16), w2_ref[...],
                 preferred_element_type=jnp.float32)                      # [TB, 64] f32
    h2 = jnp.maximum(h2 + b2_ref[...], 0.0)                               # ReLU
    # dropout (p=0.15) -> identity in eval mode

    # fc3 computed transposed: w3t[2,64] . h2[TB,64]^T -> [2, TB]
    # (batch tile lands on the lane dim -> lane-dense, unpadded store).
    out_t = lax.dot_general(w3t_ref[...], h2,
                            dimension_numbers=(((1,), (1,)), ((), ())),
                            preferred_element_type=jnp.float32)           # [2, TB] f32
    o_ref[...] = out_t + b3t_ref[...]                                     # bias broadcast over lanes


def pack_params(params):
    """One-time weight layout prep (call once, reuse across forward calls)."""
    w1, b1, w2, b2, w3, b3 = params
    return (
        w1.astype(jnp.bfloat16),                 # [85, 128] bf16 MXU operand
        b1.astype(jnp.float32),                  # [1, 128]  f32
        w2.astype(jnp.bfloat16),                 # [128, 64] bf16
        b2.astype(jnp.float32),                  # [1, 64]   f32
        w3.T.astype(jnp.float32),                # [2, 64]   f32 (tiny; keep logit precision)
        b3.reshape(OUT_FEATURES, 1).astype(jnp.float32),  # [2, 1] f32
    )


@functools.partial(jax.jit, static_argnames=("tb", "b_pad"))
def _forward_jit(x, packed, *, tb, b_pad):
    B = x.shape[0]
    xp = x if b_pad == B else jnp.pad(x, ((0, b_pad - B), (0, 0)))

    const = lambda shape: pl.BlockSpec(shape, lambda i: (0, 0))

    out_t = pl.pallas_call(
        mlp_kernel,
        out_shape=jax.ShapeDtypeStruct((OUT_FEATURES, b_pad), jnp.float32),
        grid=(b_pad // tb,),
        in_specs=[
            pl.BlockSpec((tb, IN_FEATURES), lambda i: (i, 0)),  # x tile (double-buffered stream)
            const((IN_FEATURES, H1)), const((1, H1)),           # fc1 weight/bias (resident)
            const((H1, H2)), const((1, H2)),                    # fc2 weight/bias (resident)
            const((OUT_FEATURES, H2)), const((OUT_FEATURES, 1)),  # fc3 weight^T/bias (resident)
        ],
        out_specs=pl.BlockSpec((OUT_FEATURES, tb), lambda i: (0, i)),  # [2, tb] lane-dense
        compiler_params=pltpu.CompilerParams(
            dimension_semantics=("parallel",),                  # v7x: shard batch tiles over 2 TCs
        ),
    )(xp, *packed)

    return out_t[:, :B].T                                       # [B, 2]


def net_forward(x, packed_params, *, tb_max=1024):
    """x: [B, 85] f32; packed_params from pack_params(). Returns [B, 2] f32 logits."""
    assert tb_max % 128 == 0, "tb_max must be a multiple of 128 for lane-dense output tiles"
    B = x.shape[0]
    if B <= tb_max:
        # Single full-batch tile (rounded up to the f32 sublane multiple of 8);
        # no wasted padded-row compute at small B.
        tb = max(((B + 7) // 8) * 8, 8)
        b_pad = tb
    else:
        tb = tb_max
        b_pad = pl.cdiv(B, tb) * tb
    return _forward_jit(x, packed_params, tb=tb, b_pad=b_pad)


def init_params(key):
    """PyTorch nn.Linear default init (U[-1/sqrt(fan_in), 1/sqrt(fan_in)]), stored [in, out]."""
    def linear(key, fan_in, fan_out):
        kw, kb = jax.random.split(key)
        bound = 1.0 / jnp.sqrt(jnp.float32(fan_in))
        w = jax.random.uniform(kw, (fan_in, fan_out), jnp.float32, -bound, bound)
        b = jax.random.uniform(kb, (1, fan_out), jnp.float32, -bound, bound)
        return w, b

    k1, k2, k3 = jax.random.split(key, 3)
    w1, b1 = linear(k1, IN_FEATURES, H1)
    w2, b2 = linear(k2, H1, H2)
    w3, b3 = linear(k3, H2, OUT_FEATURES)
    return (w1, b1, w2, b2, w3, b3)


def reference_forward(x, params):
    w1, b1, w2, b2, w3, b3 = params
    h1 = jnp.maximum(x @ w1 + b1, 0.0)
    h2 = jnp.maximum(h1 @ w2 + b2, 0.0)
    return h2 @ w3 + b3


if __name__ == "__main__":
    key = jax.random.PRNGKey(0)
    k_params, k_x = jax.random.split(key)

    params = init_params(k_params)
    packed = pack_params(params)

    B = 64
    x = jax.random.normal(k_x, (B, IN_FEATURES), jnp.float32)  # batch=64, features=85

    out = net_forward(x, packed)
    jax.block_until_ready(out)

    ref = reference_forward(x, params)
    assert out.shape == (B, OUT_FEATURES), out.shape
    # bf16 fc1/fc2 operands (f32 accumulation, f32 fc3) -> relaxed tolerance vs f32 reference.
    assert jnp.allclose(out, ref, atol=5e-2, rtol=5e-2), "mismatch vs reference"

    print("KERNEL_OK")
</pallas_src>

<mosaic_0001>
module attributes {stable_mosaic.version = 11 : i64} {
  func.func @mlp_kernel(%arg0: i32, %arg1: memref<64x85xf32, #tpu.memory_space<vmem>>, %arg2: memref<85x128xbf16, #tpu.memory_space<vmem>>, %arg3: memref<1x128xf32, #tpu.memory_space<vmem>>, %arg4: memref<128x64xbf16, #tpu.memory_space<vmem>>, %arg5: memref<1x64xf32, #tpu.memory_space<vmem>>, %arg6: memref<2x64xf32, #tpu.memory_space<vmem>>, %arg7: memref<2x1xf32, #tpu.memory_space<vmem>>, %arg8: memref<2x64xf32, #tpu.memory_space<vmem>>) attributes {dimension_semantics = [#tpu.dimension_semantics<parallel>], iteration_bounds = array<i64: 1>, scalar_prefetch = 0 : i64, scratch_operands = 0 : i64, tpu.core_type = #tpu.core_type<tc>, window_params = [{transform_indices = @transform_0, window_bounds = array<i64: 64, 85>}, {pipeline_mode = #tpu.pipeline_mode<synchronous>, transform_indices = @transform_1, window_bounds = array<i64: 85, 128>}, {pipeline_mode = #tpu.pipeline_mode<synchronous>, transform_indices = @transform_2, window_bounds = array<i64: 1, 128>}, {pipeline_mode = #tpu.pipeline_mode<synchronous>, transform_indices = @transform_3, window_bounds = array<i64: 128, 64>}, {pipeline_mode = #tpu.pipeline_mode<synchronous>, transform_indices = @transform_4, window_bounds = array<i64: 1, 64>}, {pipeline_mode = #tpu.pipeline_mode<synchronous>, transform_indices = @transform_5, window_bounds = array<i64: 2, 64>}, {pipeline_mode = #tpu.pipeline_mode<synchronous>, transform_indices = @transform_6, window_bounds = array<i64: 2, 1>}, {transform_indices = @transform_7, window_bounds = array<i64: 2, 64>}]} {
    %c0 = arith.constant 0 : index
    %c0_0 = arith.constant 0 : index
    %0 = vector.load %arg1[%c0, %c0_0] : memref<64x85xf32, #tpu.memory_space<vmem>>, vector<64x85xf32>
    %1 = arith.truncf %0 : vector<64x85xf32> to vector<64x85xbf16>
    %c0_1 = arith.constant 0 : index
    %c0_2 = arith.constant 0 : index
    %2 = vector.load %arg2[%c0_1, %c0_2] : memref<85x128xbf16, #tpu.memory_space<vmem>>, vector<85x128xbf16>
    %cst = arith.constant dense<0.000000e+00> : vector<64x128xf32>
    %3 = tpu.matmul %1, %2, %cst {dimension_numbers = #tpu.dot_dimension_numbers<[1], [0], [0], [1], [0, 0, 1, 1], [], []>} : vector<64x85xbf16>, vector<85x128xbf16>, vector<64x128xf32> -> vector<64x128xf32>
    %c0_3 = arith.constant 0 : index
    %c0_4 = arith.constant 0 : index
    %4 = vector.load %arg3[%c0_3, %c0_4] : memref<1x128xf32, #tpu.memory_space<vmem>>, vector<1x128xf32>
    %5 = vector.broadcast %4 : vector<1x128xf32> to vector<64x128xf32>
    %6 = arith.addf %3, %5 : vector<64x128xf32>
    %cst_5 = arith.constant 0.000000e+00 : f32
    %7 = vector.broadcast %cst_5 : f32 to vector<64x128xf32>
    %8 = arith.maximumf %6, %7 : vector<64x128xf32>
    %9 = arith.truncf %8 : vector<64x128xf32> to vector<64x128xbf16>
    %c0_6 = arith.constant 0 : index
    %c0_7 = arith.constant 0 : index
    %10 = vector.load %arg4[%c0_6, %c0_7] : memref<128x64xbf16, #tpu.memory_space<vmem>>, vector<128x64xbf16>
    %cst_8 = arith.constant dense<0.000000e+00> : vector<64x64xf32>
    %11 = tpu.matmul %9, %10, %cst_8 {dimension_numbers = #tpu.dot_dimension_numbers<[1], [0], [0], [1], [0, 0, 1, 1], [], []>} : vector<64x128xbf16>, vector<128x64xbf16>, vector<64x64xf32> -> vector<64x64xf32>
    %c0_9 = arith.constant 0 : index
    %c0_10 = arith.constant 0 : index
    %12 = vector.load %arg5[%c0_9, %c0_10] : memref<1x64xf32, #tpu.memory_space<vmem>>, vector<1x64xf32>
    %13 = vector.broadcast %12 : vector<1x64xf32> to vector<64x64xf32>
    %14 = arith.addf %11, %13 : vector<64x64xf32>
    %cst_11 = arith.constant 0.000000e+00 : f32
    %15 = vector.broadcast %cst_11 : f32 to vector<64x64xf32>
    %16 = arith.maximumf %14, %15 : vector<64x64xf32>
    %c0_12 = arith.constant 0 : index
    %c0_13 = arith.constant 0 : index
    %17 = vector.load %arg6[%c0_12, %c0_13] : memref<2x64xf32, #tpu.memory_space<vmem>>, vector<2x64xf32>
    %cst_14 = arith.constant dense<0.000000e+00> : vector<2x64xf32>
    %18 = tpu.matmul %17, %16, %cst_14 {dimension_numbers = #tpu.dot_dimension_numbers<[1], [1], [0], [0], [0, 0, 1, 0], [], []>} : vector<2x64xf32>, vector<64x64xf32>, vector<2x64xf32> -> vector<2x64xf32>
    %c0_15 = arith.constant 0 : index
    %c0_16 = arith.constant 0 : index
    %19 = vector.load %arg7[%c0_15, %c0_16] : memref<2x1xf32, #tpu.memory_space<vmem>>, vector<2x1xf32>
    %20 = vector.broadcast %19 : vector<2x1xf32> to vector<2x64xf32>
    %21 = arith.addf %18, %20 : vector<2x64xf32>
    %c0_17 = arith.constant 0 : index
    %c0_18 = arith.constant 0 : index
    %22 = vector.load %arg8[%c0_17, %c0_18] : memref<2x64xf32, #tpu.memory_space<vmem>>, vector<2x64xf32>
    tpu.vector_store %arg8[%c0_17, %c0_18], %21 {strides = array<i32>} : memref<2x64xf32, #tpu.memory_space<vmem>>, vector<2x64xf32>,
    return
  }
  func.func @transform_0(%arg0: i32) -> (i32, i32) {
    %c0_i32 = arith.constant 0 : i32
    %c0_i32_0 = arith.constant 0 : i32
    return %arg0, %c0_i32 : i32, i32
  }
  func.func @transform_1(%arg0: i32) -> (i32, i32) {
    %c0_i32 = arith.constant 0 : i32
    %c0_i32_0 = arith.constant 0 : i32
    %c0_i32_1 = arith.constant 0 : i32
    return %c0_i32, %c0_i32_0 : i32, i32
  }
  func.func @transform_2(%arg0: i32) -> (i32, i32) {
    %c0_i32 = arith.constant 0 : i32
    %c0_i32_0 = arith.constant 0 : i32
    %c0_i32_1 = arith.constant 0 : i32
    return %c0_i32, %c0_i32_0 : i32, i32
  }
  func.func @transform_3(%arg0: i32) -> (i32, i32) {
    %c0_i32 = arith.constant 0 : i32
    %c0_i32_0 = arith.constant 0 : i32
    %c0_i32_1 = arith.constant 0 : i32
    return %c0_i32, %c0_i32_0 : i32, i32
  }
  func.func @transform_4(%arg0: i32) -> (i32, i32) {
    %c0_i32 = arith.constant 0 : i32
    %c0_i32_0 = arith.constant 0 : i32
    %c0_i32_1 = arith.constant 0 : i32
    return %c0_i32, %c0_i32_0 : i32, i32
  }
  func.func @transform_5(%arg0: i32) -> (i32, i32) {
    %c0_i32 = arith.constant 0 : i32
    %c0_i32_0 = arith.constant 0 : i32
    %c0_i32_1 = arith.constant 0 : i32
    return %c0_i32, %c0_i32_0 : i32, i32
  }
  func.func @transform_6(%arg0: i32) -> (i32, i32) {
    %c0_i32 = arith.constant 0 : i32
    %c0_i32_0 = arith.constant 0 : i32
    %c0_i32_1 = arith.constant 0 : i32
    return %c0_i32, %c0_i32_0 : i32, i32
  }
  func.func @transform_7(%arg0: i32) -> (i32, i32) {
    %c0_i32 = arith.constant 0 : i32
    %c0_i32_0 = arith.constant 0 : i32
    return %c0_i32, %arg0 : i32, i32
  }
}

</mosaic_0001>

<llo_original>
// kernel: _forward_jit.1
$region0: #{_forward_jit.1}
  #allocation0 [shape = 'u32[]', space=smem, size = 0x4, offset = 0x4, fixed_abs, tag = 'smem constant byte address 0x4 - core index']
  #allocation1 [shape = 'u32[144,128]{1,0:T(1,128)}', space=vmem, size = 0x12000, scoped, tag = 'internal scratch']
  %s0 = inlined_call_operand.vmem [shape: f32[64,85], index: 0, kind: input, shape index: {}]
  %s1 = inlined_call_operand.hbm [shape: bf16[85,128], index: 1, kind: input, shape index: {}]
  %s2 = inlined_call_operand.vmem [shape: f32[1,128], index: 2, kind: input, shape index: {}]
  %s3 = inlined_call_operand.vmem [shape: bf16[128,64], index: 3, kind: input, shape index: {}]
  %s4 = inlined_call_operand.vmem [shape: f32[1,64], index: 4, kind: input, shape index: {}]
  %s5 = inlined_call_operand.vmem [shape: f32[2,64], index: 5, kind: input, shape index: {}]
  %s6 = inlined_call_operand.vmem [shape: f32[2,1], index: 6, kind: input, shape index: {}]
  %s7 = inlined_call_operand.hbm [shape: f32[2,64], index: 7, kind: output, shape index: {}]
  %s8 = sld [smem:[#allocation0]]
  $region42: #{_forward_jit.1} parent=0
    _
  %s10 = ssub.s32 1, %s8
  %s11 = scalar_select 0, %s10, %s8
  $region1: #{_forward_jit.1} parent=0
    #allocation2 [shape = 'u8[22528]{0}', space=vmem, size = 0x5800, scoped, tag = 'input window, operand 1, single buffered']
    #allocation3 [shape = 's32[1]{0}', space=sflag, size = 0x4, scoped, tag = 'scoped memory for _forward_jit.1']
    #allocation4 [shape = 's32[1]{0}', space=sflag, size = 0x4, scoped, tag = 'scoped memory for _forward_jit.1']
    #allocation5 [shape = 'u8[1024]{0}', space=vmem, size = 0x400, scoped, tag = 'output window, operand 0, single buffered']
    %12 = vsyncpa [#allocation3], 0
    %13 = vsyncpa [#allocation4], 0
    // Predicated region
    $region2: #{_forward_jit.1} parent=1 // pred_check
      _
    $region3: #{_forward_jit.1} parent=1 // pred_check_branch
      %15 = sbr.rel (0) target = $region5
    $region4: #{_forward_jit.1} parent=1 // pred_region
      _
    $region5: #{_forward_jit.1} parent=1 // pred_fallthru
      _
    // Predicated region
    $region6: #{_forward_jit.1} parent=1 // pred_check
      _
    $region7: #{_forward_jit.1} parent=1 // pred_check_branch
      %17 = sbr.rel (0) target = $region9
    $region8: #{_forward_jit.1} parent=1 // pred_region
      %s19 = ssub.s32 704, 704
      %20 = vsyncadd [#allocation3], %s19
      %s21 = sshll.u32 [#allocation2], 4
      %s22 = int_to_ptr.vmem [resolvable:$true] %s21
      %27 = dma.hbm_to_vmem [thread:$0]  %s1, 704, %s22, [#allocation3], 64, 64, 4
    $region9: #{_forward_jit.1} parent=1 // pred_fallthru
      _
    // Predicated region
    $region10: #{_forward_jit.1} parent=1 // pred_check
      _
    $region11: #{_forward_jit.1} parent=1 // pred_check_branch
      %29 = sbr.rel (0) target = $region13
    $region12: #{_forward_jit.1} parent=1 // pred_region
      _
    $region13: #{_forward_jit.1} parent=1 // pred_fallthru
      _
    // Predicated region
    $region14: #{_forward_jit.1} parent=1 // pred_check
      _
    $region15: #{_forward_jit.1} parent=1 // pred_check_branch
      %31 = sbr.rel (0) target = $region17
    $region16: #{_forward_jit.1} parent=1 // pred_region
      _
    $region17: #{_forward_jit.1} parent=1 // pred_fallthru
      _
    // Predicated region
    $region18: #{_forward_jit.1} parent=1 // pred_check
      _
    $region19: #{_forward_jit.1} parent=1 // pred_check_branch
      %33 = sbr.rel (0) target = $region21
    $region20: #{_forward_jit.1} parent=1 // pred_region
      _
    $region21: #{_forward_jit.1} parent=1 // pred_fallthru
      _
    // Predicated region
    $region22: #{_forward_jit.1} parent=1 // pred_check
      _
    $region23: #{_forward_jit.1} parent=1 // pred_check_branch
      %35 = sbr.rel (0) target = $region25
    $region24: #{_forward_jit.1} parent=1 // pred_region
      _
    $region25: #{_forward_jit.1} parent=1 // pred_fallthru
      _
    // Predicated region
    $region26: #{_forward_jit.1} parent=1 // pred_check
      _
    $region27: #{_forward_jit.1} parent=1 // pred_check_branch
      %37 = sbr.rel (0) target = $region29
    $region28: #{_forward_jit.1} parent=1 // pred_region
      _
    $region29: #{_forward_jit.1} parent=1 // pred_fallthru
      _
    // Predicated region
    $region30: #{_forward_jit.1} parent=1 // pred_check
      _
    $region31: #{_forward_jit.1} parent=1 // pred_check_branch
      %39 = sbr.rel (0) target = $region33
    $region32: #{_forward_jit.1} parent=1 // pred_region
      %40 = dma.done [#allocation3], 704
    $region33: #{_forward_jit.1} parent=1 // pred_fallthru
      _
    %v42 = vld [vmem:[%s0] sm:$0xff]
    %v43 = vld [vmem:[%s0 + $0x8] sm:$0xff]
    %v44 = vld [vmem:[%s0 + $0x10] sm:$0xff]
    %v45 = vld [vmem:[%s0 + $0x18] sm:$0xff]
    %v46 = vld [vmem:[%s0 + $0x20] sm:$0xff]
    %v47 = vld [vmem:[%s0 + $0x28] sm:$0xff]
    %v48 = vld [vmem:[%s0 + $0x30] sm:$0xff]
    %v49 = vld [vmem:[%s0 + $0x38] sm:$0xff]
    %v50 = vpack.c.bf16 %v43, %v42
    %v51 = vpack.c.bf16 %v45, %v44
    %v52 = vpack.c.bf16 %v47, %v46
    %v53 = vpack.c.bf16 %v49, %v48
    %v54 = vld [vmem:[#allocation2] sm:$0xf]
    %v55 = vld [vmem:[#allocation2 + $0x4] sm:$0xf]
    %v56 = vld [vmem:[#allocation2 + $0x8] sm:$0xf]
    %v57 = vld [vmem:[#allocation2 + $0xc] sm:$0xf]
    %v58 = vld [vmem:[#allocation2 + $0x10] sm:$0xf]
    %v59 = vld [vmem:[#allocation2 + $0x14] sm:$0xf]
    %v60 = vld [vmem:[#allocation2 + $0x18] sm:$0xf]
    %v61 = vld [vmem:[#allocation2 + $0x1c] sm:$0xf]
    %v62 = vld [vmem:[#allocation2 + $0x20] sm:$0xf]
    %v63 = vld [vmem:[#allocation2 + $0x24] sm:$0xf]
    %v64 = vld [vmem:[#allocation2 + $0x28] sm:$0x7]
    %v65 = vld [vmem:[%s2] sm:$0x1]
    %v67 = vlaneseq
    %v68 = vshrl.u32 %v67, 7
    %v69 = vsub.s32 0, %v68
    %v70 = vrot.slane %v65, %v69
    %v83 = vunpack.c.l.b16 %v54
    %v84 = vunpack.c.l.b16 %v55
    %v85 = vunpack.c.l.b16 %v56
    %v86 = vunpack.c.l.b16 %v57
    %v87 = vunpack.c.l.b16 %v58
    %v88 = vunpack.c.l.b16 %v59
    %v89 = vunpack.c.l.b16 %v60
    %v90 = vunpack.c.l.b16 %v61
    %v91 = vunpack.c.l.b16 %v62
    %v92 = vunpack.c.l.b16 %v63
    %v93 = vunpack.c.l.b16 %v64
    %v94 = vpack.c.b16 %v84, %v83
    %v95 = vpack.c.b16 %v86, %v85
    %v96 = vpack.c.b16 %v88, %v87
    %v97 = vpack.c.b16 %v90, %v89
    %v98 = vpack.c.b16 %v92, %v91
    %v99 = vpack.c.b16 %v93, %v93
    %vm105 = vcmask 695296
    %v107 = vsel %vm105, %v50, 0
    %v110 = vsel %vm105, %v51, 0
    %v113 = vsel %vm105, %v52, 0
    %v116 = vsel %vm105, %v53, 0
    %vm118 = vcmask 1041408
    %vm119 = vcmask 1042432
    %v120 = vsel %vm118, 4294967295, 65535
    %v121 = vsel %vm119, %v120, 0
    %v123 = vand.u32 %v99, %v121
    %125 = vmatprep.subr.bf16.mxu0 0
    %126 = vmatpush1.bf16.msra.mxu0 %v94
    %127 = vmatprep.subr.bf16.mxu0 0
    %128 = vmatpush1.bf16.msra.mxu0 %v95
    %129 = vmatprep.subr.bf16.mxu0 0
    %130 = vmatpush1.bf16.msra.mxu0 %v96
    %131 = vmatprep.subr.bf16.mxu0 0
    %132 = vmatpush1.bf16.msra.mxu0 %v97
    %133 = vmatprep.subr.bf16.mxu0 0
    %134 = vmatpush1.bf16.msra.mxu0 %v98
    %135 = vmatprep.subr.bf16.mxu0 0
    %136 = vmatpush1.bf16.msra.mxu0 %v123
    %137 = vmatprep.subr.bf16.mxu0 0
    %138 = vmatpush1.bf16.msra.mxu0 0
    %139 = vmatprep.subr.bf16.mxu0 0
    %140 = vmatpush1.bf16.msra.mxu0 0
    %141 = vmatprep.subr.bf16.mxu0 0
    %142 = vmatpush1.bf16.msra.mxu0 0
    %143 = vmatprep.subr.bf16.mxu0 0
    %144 = vmatpush1.bf16.msra.mxu0 0
    %145 = vmatprep.subr.bf16.mxu0 0
    %146 = vmatpush1.bf16.msra.mxu0 0
    %147 = vmatprep.subr.bf16.mxu0 0
    %148 = vmatpush1.bf16.msra.mxu0 0
    %149 = vmatprep.subr.bf16.mxu0 0
    %150 = vmatpush1.bf16.msra.mxu0 0
    %151 = vmatprep.subr.bf16.mxu0 0
    %152 = vmatpush1.bf16.msra.mxu0 0
    %153 = vmatprep.subr.bf16.mxu0 0
    %154 = vmatpush1.bf16.msra.mxu0 0
    %155 = vmatprep.subr.bf16.mxu0 0
    %156 = vmatpush1.bf16.msra.mxu0 0
    %157 = vmatprep.mubr.bf16.mxu0 0
    %158 = vmatmul.mubr.bf16.gmra.mrb[0].mxu0 %v107
    %v159 = vpop.f32.mrb[0].mxu0
    %v160 = vadd.f32 %v70, %v159
    %v161 = vpop.f32.mrb[0].mxu0
    %v162 = vpop.f32.mrb[0].mxu0
    %v163 = vadd.f32 %v70, %v162
    %v164 = vpop.f32.mrb[0].mxu0
    %165 = vmatprep.mubr.bf16.mxu0 0
    %166 = vmatmul.mubr.bf16.gmra.mrb[0].mxu0 %v110
    %v167 = vpop.f32.mrb[0].mxu0
    %v168 = vadd.f32 %v70, %v167
    %v169 = vpop.f32.mrb[0].mxu0
    %v170 = vpop.f32.mrb[0].mxu0
    %v171 = vadd.f32 %v70, %v170
    %v172 = vpop.f32.mrb[0].mxu0
    %173 = vmatprep.mubr.bf16.mxu0 0
    %174 = vmatmul.mubr.bf16.gmra.mrb[0].mxu0 %v113
    %v175 = vpop.f32.mrb[0].mxu0
    %v176 = vadd.f32 %v70, %v175
    %v177 = vpop.f32.mrb[0].mxu0
    %v178 = vpop.f32.mrb[0].mxu0
    %v179 = vadd.f32 %v70, %v178
    %v180 = vpop.f32.mrb[0].mxu0
    %181 = vmatprep.mubr.bf16.mxu0 0
    %182 = vmatmul.mubr.bf16.gmra.mrb[0].mxu0 %v116
    %v183 = vpop.f32.mrb[0].mxu0
    %v184 = vadd.f32 %v70, %v183
    %v185 = vpop.f32.mrb[0].mxu0
    %v186 = vpop.f32.mrb[0].mxu0
    %v187 = vadd.f32 %v70, %v186
    %v188 = vpop.f32.mrb[0].mxu0
    %189 = vdwg.mxu0
    %v190 = vmax.f32 %v160, 0.0
    %v191 = vmax.f32 %v163, 0.0
    %v192 = vmax.f32 %v168, 0.0
    %v193 = vmax.f32 %v171, 0.0
    %v194 = vmax.f32 %v176, 0.0
    %v195 = vmax.f32 %v179, 0.0
    %v196 = vmax.f32 %v184, 0.0
    %v197 = vmax.f32 %v187, 0.0
    %v198 = vpack.c.bf16 %v191, %v190
    %v199 = vpack.c.bf16 %v193, %v192
    %v200 = vpack.c.bf16 %v195, %v194
    %v201 = vpack.c.bf16 %v197, %v196
    %v202 = vld [vmem:[%s3] sm:$0xf]
    %v203 = vld [vmem:[%s3 + $0x4] sm:$0xf]
    %v204 = vld [vmem:[%s3 + $0x8] sm:$0xf]
    %v205 = vld [vmem:[%s3 + $0xc] sm:$0xf]
    %v206 = vld [vmem:[%s3 + $0x10] sm:$0xf]
    %v207 = vld [vmem:[%s3 + $0x14] sm:$0xf]
    %v208 = vld [vmem:[%s3 + $0x18] sm:$0xf]
    %v209 = vld [vmem:[%s3 + $0x1c] sm:$0xf]
    %v210 = vld [vmem:[%s3 + $0x20] sm:$0xf]
    %v211 = vld [vmem:[%s3 + $0x24] sm:$0xf]
    %v212 = vld [vmem:[%s3 + $0x28] sm:$0xf]
    %v213 = vld [vmem:[%s3 + $0x2c] sm:$0xf]
    %v214 = vld [vmem:[%s3 + $0x30] sm:$0xf]
    %v215 = vld [vmem:[%s3 + $0x34] sm:$0xf]
    %v216 = vld [vmem:[%s3 + $0x38] sm:$0xf]
    %v217 = vld [vmem:[%s3 + $0x3c] sm:$0xf]
    %v218 = vld [vmem:[%s4] sm:$0x1]
    %v220 = vlaneseq
    %v221 = vshrl.u32 %v220, 7
    %v222 = vsub.s32 0, %v221
    %v223 = vrot.slane %v218, %v222
    %v241 = vunpack.c.l.b16 %v202
    %v242 = vunpack.c.l.b16 %v203
    %v243 = vunpack.c.l.b16 %v204
    %v244 = vunpack.c.l.b16 %v205
    %v245 = vunpack.c.l.b16 %v206
    %v246 = vunpack.c.l.b16 %v207
    %v247 = vunpack.c.l.b16 %v208
    %v248 = vunpack.c.l.b16 %v209
    %v249 = vunpack.c.l.b16 %v210
    %v250 = vunpack.c.l.b16 %v211
    %v251 = vunpack.c.l.b16 %v212
    %v252 = vunpack.c.l.b16 %v213
    %v253 = vunpack.c.l.b16 %v214
    %v254 = vunpack.c.l.b16 %v215
    %v255 = vunpack.c.l.b16 %v216
    %v256 = vunpack.c.l.b16 %v217
    %v257 = vpack.c.b16 %v242, %v241
    %v258 = vpack.c.b16 %v244, %v243
    %v259 = vpack.c.b16 %v246, %v245
    %v260 = vpack.c.b16 %v248, %v247
    %v261 = vpack.c.b16 %v250, %v249
    %v262 = vpack.c.b16 %v252, %v251
    %v263 = vpack.c.b16 %v254, %v253
    %v264 = vpack.c.b16 %v256, %v255
    %273 = vmatprep.subr.bf16.mxu0 0
    %274 = vmatpush1.bf16.msra.mxu0 %v257
    %275 = vmatprep.subr.bf16.mxu0 0
    %276 = vmatpush1.bf16.msra.mxu0 %v258
    %277 = vmatprep.subr.bf16.mxu0 0
    %278 = vmatpush1.bf16.msra.mxu0 %v259
    %279 = vmatprep.subr.bf16.mxu0 0
    %280 = vmatpush1.bf16.msra.mxu0 %v260
    %281 = vmatprep.subr.bf16.mxu0 0
    %282 = vmatpush1.bf16.msra.mxu0 %v261
    %283 = vmatprep.subr.bf16.mxu0 0
    %284 = vmatpush1.bf16.msra.mxu0 %v262
    %285 = vmatprep.subr.bf16.mxu0 0
    %286 = vmatpush1.bf16.msra.mxu0 %v263
    %287 = vmatprep.subr.bf16.mxu0 0
    %288 = vmatpush1.bf16.msra.mxu0 %v264
    %289 = vmatprep.subr.bf16.mxu0 0
    %290 = vmatpush1.bf16.msra.mxu0 0
    %291 = vmatprep.subr.bf16.mxu0 0
    %292 = vmatpush1.bf16.msra.mxu0 0
    %293 = vmatprep.subr.bf16.mxu0 0
    %294 = vmatpush1.bf16.msra.mxu0 0
    %295 = vmatprep.subr.bf16.mxu0 0
    %296 = vmatpush1.bf16.msra.mxu0 0
    %297 = vmatprep.subr.bf16.mxu0 0
    %298 = vmatpush1.bf16.msra.mxu0 0
    %299 = vmatprep.subr.bf16.mxu0 0
    %300 = vmatpush1.bf16.msra.mxu0 0
    %301 = vmatprep.subr.bf16.mxu0 0
    %302 = vmatpush1.bf16.msra.mxu0 0
    %303 = vmatprep.subr.bf16.mxu0 0
    %304 = vmatpush1.bf16.msra.mxu0 0
    %305 = vmatprep.mubr.bf16.mxu0 0
    %306 = vmatmul.mubr.bf16.gmra.mrb[0].mxu0 %v198
    %v307 = vpop.f32.mrb[0].mxu0
    %v308 = vadd.f32 %v223, %v307
    %v309 = vpop.f32.mrb[0].mxu0
    %v310 = vpop.f32.mrb[0].mxu0
    %v311 = vadd.f32 %v223, %v310
    %v312 = vpop.f32.mrb[0].mxu0
    %313 = vmatprep.mubr.bf16.mxu0 0
    %314 = vmatmul.mubr.bf16.gmra.mrb[0].mxu0 %v199
    %v315 = vpop.f32.mrb[0].mxu0
    %v316 = vadd.f32 %v223, %v315
    %v317 = vpop.f32.mrb[0].mxu0
    %v318 = vpop.f32.mrb[0].mxu0
    %v319 = vadd.f32 %v223, %v318
    %v320 = vpop.f32.mrb[0].mxu0
    %321 = vmatprep.mubr.bf16.mxu0 0
    %322 = vmatmul.mubr.bf16.gmra.mrb[0].mxu0 %v200
    %v323 = vpop.f32.mrb[0].mxu0
    %v324 = vadd.f32 %v223, %v323
    %v325 = vpop.f32.mrb[0].mxu0
    %v326 = vpop.f32.mrb[0].mxu0
    %v327 = vadd.f32 %v223, %v326
    %v328 = vpop.f32.mrb[0].mxu0
    %329 = vmatprep.mubr.bf16.mxu0 0
    %330 = vmatmul.mubr.bf16.gmra.mrb[0].mxu0 %v201
    %v331 = vpop.f32.mrb[0].mxu0
    %v332 = vadd.f32 %v223, %v331
    %v333 = vpop.f32.mrb[0].mxu0
    %v334 = vpop.f32.mrb[0].mxu0
    %v335 = vadd.f32 %v223, %v334
    %v336 = vpop.f32.mrb[0].mxu0
    %337 = vdwg.mxu0
    %v338 = vmax.f32 %v308, 0.0
    %v339 = vmax.f32 %v311, 0.0
    %v340 = vmax.f32 %v316, 0.0
    %v341 = vmax.f32 %v319, 0.0
    %v342 = vmax.f32 %v324, 0.0
    %v343 = vmax.f32 %v327, 0.0
    %v344 = vmax.f32 %v332, 0.0
    %v345 = vmax.f32 %v335, 0.0
    %v346 = vld [vmem:[%s5] sm:$0x3]
    %v347 = vld [vmem:[%s6] sm:$0x3]
    %349 = vset.pattern.permute.xlu0 0
    %350 = vperm.xlu0 %349, %v347
    %v351 = vpop.permute.xlu0 %350
    %vm353 = vcmask 523264
    %v355 = vsel %vm353, %v346, 0
    %v358 = vsel %vm353, %v338, 0
    %v361 = vsel %vm353, %v339, 0
    %v364 = vsel %vm353, %v340, 0
    %v367 = vsel %vm353, %v341, 0
    %v370 = vsel %vm353, %v342, 0
    %v373 = vsel %vm353, %v343, 0
    %v376 = vsel %vm353, %v344, 0
    %v379 = vsel %vm353, %v345, 0
    %381 = vmatprep.subr.mxu0 0.0
    %382 = vmatpush1.xpose.msra.mxu0 %v358
    %383 = vmatprep.subr.mxu0 0.0
    %384 = vmatpush1.xpose.msra.mxu0 %v361
    %385 = vmatprep.subr.mxu0 0.0
    %386 = vmatpush1.xpose.msra.mxu0 %v364
    %387 = vmatprep.subr.mxu0 0.0
    %388 = vmatpush1.xpose.msra.mxu0 %v367
    %389 = vmatprep.subr.mxu0 0.0
    %390 = vmatpush1.xpose.msra.mxu0 %v370
    %391 = vmatprep.subr.mxu0 0.0
    %392 = vmatpush1.xpose.msra.mxu0 %v373
    %393 = vmatprep.subr.mxu0 0.0
    %394 = vmatpush1.xpose.msra.mxu0 %v376
    %395 = vmatprep.subr.mxu0 0.0
    %396 = vmatpush1.xpose.msra.mxu0 %v379
    %397 = vmatprep.subr.mxu0 0.0
    %398 = vmatpush1.xpose.msra.mxu0 0.0
    %399 = vmatprep.subr.mxu0 0.0
    %400 = vmatpush1.xpose.msra.mxu0 0.0
    %401 = vmatprep.subr.mxu0 0.0
    %402 = vmatpush1.xpose.msra.mxu0 0.0
    %403 = vmatprep.subr.mxu0 0.0
    %404 = vmatpush1.xpose.msra.mxu0 0.0
    %405 = vmatprep.subr.mxu0 0.0
    %406 = vmatpush1.xpose.msra.mxu0 0.0
    %407 = vmatprep.subr.mxu0 0.0
    %408 = vmatpush1.xpose.msra.mxu0 0.0
    %409 = vmatprep.subr.mxu0 0.0
    %410 = vmatpush1.xpose.msra.mxu0 0.0
    %411 = vmatprep.subr.mxu0 0.0
    %412 = vmatpush1.xpose.msra.mxu0 0.0
    %413 = vmatprep.subr.mxu0 0.0
    %414 = vmatpush1.xpose.msra.mxu0 0.0
    %415 = vmatprep.subr.mxu0 0.0
    %416 = vmatpush1.xpose.msra.mxu0 0.0
    %417 = vmatprep.subr.mxu0 0.0
    %418 = vmatpush1.xpose.msra.mxu0 0.0
    %419 = vmatprep.subr.mxu0 0.0
    %420 = vmatpush1.xpose.msra.mxu0 0.0
    %421 = vmatprep.subr.mxu0 0.0
    %422 = vmatpush1.xpose.msra.mxu0 0.0
    %423 = vmatprep.subr.mxu0 0.0
    %424 = vmatpush1.xpose.msra.mxu0 0.0
    %425 = vmatprep.subr.mxu0 0.0
    %426 = vmatpush1.xpose.msra.mxu0 0.0
    %427 = vmatprep.subr.mxu0 0.0
    %428 = vmatpush1.xpose.msra.mxu0 0.0
    %429 = vmatprep.subr.mxu0 0.0
    %430 = vmatpush1.xpose.msra.mxu0 0.0
    %431 = vmatprep.subr.mxu0 0.0
    %432 = vmatpush1.xpose.msra.mxu0 0.0
    %433 = vmatprep.subr.mxu0 0.0
    %434 = vmatpush1.xpose.msra.mxu0 0.0
    %435 = vmatprep.subr.mxu0 0.0
    %436 = vmatpush1.xpose.msra.mxu0 0.0
    %437 = vmatprep.subr.mxu0 0.0
    %438 = vmatpush1.xpose.msra.mxu0 0.0
    %439 = vmatprep.subr.mxu0 0.0
    %440 = vmatpush1.xpose.msra.mxu0 0.0
    %441 = vmatprep.subr.mxu0 0.0
    %442 = vmatpush1.xpose.msra.mxu0 0.0
    %443 = vmatprep.subr.mxu0 0.0
    %444 = vmatpush1.xpose.msra.mxu0 0.0
    %445 = vmatprep.mubr.f32.mxu0 0.0
    %446 = vmatmul.mubr.f32.gmra.mrb[0].mxu0 %v355
    %v447 = vpop.f32.mrb[0].mxu0
    %v448 = vadd.f32 %v351, %v447
    %v449 = vpop.f32.mrb[0].mxu0
    %450 = vdwg.mxu0
    %vm451 = vcmask 517120
    %452 = vst.msk [vmem:[#allocation5] sm:$0x3] %vm451, %v448
    // Predicated region
    $region34: #{_forward_jit.1} parent=1 // pred_check
      _
    $region35: #{_forward_jit.1} parent=1 // pred_check_branch
      %454 = sbr.rel (0) target = $region37
    $region36: #{_forward_jit.1} parent=1 // pred_region
      %s456 = ssub.s32 32, 32
      %457 = vsyncadd [#allocation4], %s456
      %s459 = sshll.u32 [#allocation5], 4
      %s460 = int_to_ptr.vmem [resolvable:$true] %s459
      %462 = dma.vmem_to_hbm [thread:$0]  %s460, 32, %s7, [#allocation4]
    $region37: #{_forward_jit.1} parent=1 // pred_fallthru
      _
    // Predicated region
    $region38: #{_forward_jit.1} parent=1 // pred_check
      _
    $region39: #{_forward_jit.1} parent=1 // pred_check_branch
      %464 = sbr.rel (0) target = $region41
    $region40: #{_forward_jit.1} parent=1 // pred_region
      %465 = dma.done [#allocation4], 32
    $region41: #{_forward_jit.1} parent=1 // pred_fallthru
      _
    %466 = vsyncpa [#allocation3], 1
    %467 = vsyncpa [#allocation4], 1

</llo_original>
